<compile_context>
chip_gen: v7x
topology: tpu7x:2x2x1
jax: 0.10.0
libtpu: 0.0.40
codegen_flags: <defaults>
</compile_context>

<pallas_src>
import functools

import jax
import jax.numpy as jnp
from jax import lax
from jax.experimental import pallas as pl
from jax.experimental.pallas import tpu as pltpu

W_NONZERO = 2.0   # weights[0] applied where target != 0
W_ZERO = 1.0      # weights[1] applied where target == 0


def _round_up(n, m):
    return ((n + m - 1) // m) * m


def _weighted_bce_kernel(x_ref, t_ref, o_ref, num_acc, den_acc, *,
                         n_valid, tn, needs_mask):
    """One (TB, TN) tile: accumulate weighted-BCE row sums; finalize divides."""
    k = pl.program_id(1)
    last = pl.num_programs(1) - 1

    @pl.when(k == 0)
    def _():
        num_acc[...] = jnp.zeros_like(num_acc)
        den_acc[...] = jnp.zeros_like(den_acc)

    def _accum(mask_tail):
        x = x_ref[...].astype(jnp.float32)
        t = t_ref[...].astype(jnp.float32)
        if mask_tail:
            col = k * tn + lax.broadcasted_iota(jnp.int32, x.shape, 1)
            valid = col < n_valid
            # Mask BOTH logits and targets: out-of-bounds lanes contain
            # garbage (possibly Inf/NaN); 0 * Inf would poison the row sums.
            x = jnp.where(valid, x, 0.0)
            t = jnp.where(valid, t, 0.0)
        # weights=[2, 1]  ->  w = 1 + indicator(target != 0).
        w = 1.0 + (t != 0.0).astype(jnp.float32)
        if mask_tail:
            w = jnp.where(valid, w, 0.0)
        # Numerically-stable BCEWithLogits (reduction='none'):
        #   loss = max(x, 0) - x*t + log(1 + exp(-|x|))
        # exp/log1p land on the EUP slot, hidden under HBM traffic.
        bce = jnp.maximum(x, 0.0) - x * t + jnp.log1p(jnp.exp(-jnp.abs(x)))
        # Per-step cross-lane (XLU) reduction — XLU slot is otherwise idle,
        # so this is free and avoids full-tile accumulator traffic.
        num_acc[...] += (bce * w).sum(axis=1, keepdims=True)
        den_acc[...] += w.sum(axis=1, keepdims=True)

    if needs_mask:
        @pl.when(k != last)
        def _():
            _accum(False)

        @pl.when(k == last)
        def _():
            _accum(True)
    else:
        _accum(False)

    @pl.when(k == last)
    def _():
        # Exact divide (once per batch tile); pl.reciprocal(approx=True) would
        # break the 1e-5/1e-6 test tolerance.
        o_ref[...] = num_acc[...] / den_acc[...]


def weighted_loss(inputs, targets, reduction="mean", *, tb_max=256, tn_max=2048):
    """WeightedLoss.forward: weighted BCEWithLogits, per-row normalized."""
    B, N = inputs.shape
    assert targets.shape == (B, N)

    itemsize = min(jnp.dtype(inputs.dtype).itemsize,
                   jnp.dtype(targets.dtype).itemsize)
    row_align = {4: 8, 2: 16, 1: 32}.get(int(itemsize), 8)

    # Batch tile: aim for >= 2 batch tiles so the "parallel" grid axis keeps
    # both v7x TensorCores busy (no effect on v5e/v6e); cap at tb_max.
    half_b = -(-B // 2)
    TB = max(min(_round_up(half_b, row_align), tb_max), row_align)
    TN = min(_round_up(N, 128), tn_max)

    grid = (pl.cdiv(B, TB), pl.cdiv(N, TN))
    needs_mask = (N % TN) != 0

    kernel = functools.partial(
        _weighted_bce_kernel, n_valid=N, tn=TN, needs_mask=needs_mask)

    per_row = pl.pallas_call(
        kernel,
        out_shape=jax.ShapeDtypeStruct((B, 1), jnp.float32),
        grid_spec=pltpu.PrefetchScalarGridSpec(
            num_scalar_prefetch=0,
            grid=grid,
            in_specs=[
                pl.BlockSpec((TB, TN), lambda i, k: (i, k)),
                pl.BlockSpec((TB, TN), lambda i, k: (i, k)),
            ],
            out_specs=pl.BlockSpec((TB, 1), lambda i, k: (i, 0)),
            scratch_shapes=[
                pltpu.VMEM((TB, 1), jnp.float32),   # weighted-loss row sums
                pltpu.VMEM((TB, 1), jnp.float32),   # weight row sums
            ],
        ),
        compiler_params=pltpu.CompilerParams(
            dimension_semantics=("parallel", "arbitrary"),
            vmem_limit_bytes=48 << 20),
    )(inputs, targets)

    per_row = per_row[:, 0]
    if reduction == "mean":
        return per_row.mean()
    elif reduction == "sum":
        return per_row.sum()
    return per_row


def _reference(inputs, targets):
    x = inputs.astype(jnp.float32)
    t = targets.astype(jnp.float32)
    bce = jnp.maximum(x, 0.0) - x * t + jnp.log1p(jnp.exp(-jnp.abs(x)))
    w = jnp.where(t != 0.0, W_NONZERO, W_ZERO)
    return ((bce * w).sum(axis=1) / w.sum(axis=1)).mean()


if __name__ == "__main__":
    key = jax.random.PRNGKey(0)
    k1, k2, k3, k4, k5, k6 = jax.random.split(key, 6)

    # Test 1: tile-aligned shapes.
    B, N = 8, 128
    inputs = jax.random.normal(k1, (B, N), dtype=jnp.float32)
    targets = (jax.random.uniform(k2, (B, N)) > 0.5).astype(jnp.float32)
    out = jax.block_until_ready(weighted_loss(inputs, targets))
    ref = _reference(inputs, targets)
    assert jnp.allclose(out, ref, rtol=1e-5, atol=1e-6), (out, ref)

    # Test 2: non-tile-aligned shapes (partial last tiles on both axes,
    # exercises the in-kernel logit/target/weight masking — no jnp.pad).
    B2, N2 = 6, 200
    inputs2 = jax.random.normal(k3, (B2, N2), dtype=jnp.float32)
    targets2 = (jax.random.uniform(k4, (B2, N2)) > 0.5).astype(jnp.float32)
    out2 = jax.block_until_ready(weighted_loss(inputs2, targets2))
    ref2 = _reference(inputs2, targets2)
    assert jnp.allclose(out2, ref2, rtol=1e-5, atol=1e-6), (out2, ref2)

    # Test 3: bf16 inputs (halved HBM traffic path, TB rounded to 16 rows).
    B3, N3 = 16, 300
    inputs3 = jax.random.normal(k5, (B3, N3), dtype=jnp.bfloat16)
    targets3 = (jax.random.uniform(k6, (B3, N3)) > 0.5).astype(jnp.bfloat16)
    out3 = jax.block_until_ready(weighted_loss(inputs3, targets3))
    ref3 = _reference(inputs3, targets3)
    assert jnp.allclose(out3, ref3, rtol=1e-4, atol=1e-5), (out3, ref3)

    print("KERNEL_OK")
</pallas_src>

<mosaic_0001>
module attributes {stable_mosaic.version = 11 : i64} {
  func.func @_weighted_bce_kernel(%arg0: i32, %arg1: i32, %arg2: memref<8x128xf32, #tpu.memory_space<vmem>>, %arg3: memref<8x128xf32, #tpu.memory_space<vmem>>, %arg4: memref<8x1xf32, #tpu.memory_space<vmem>>, %arg5: memref<8x1xf32, #tpu.memory_space<vmem>>, %arg6: memref<8x1xf32, #tpu.memory_space<vmem>>) attributes {dimension_semantics = [#tpu.dimension_semantics<parallel>, #tpu.dimension_semantics<arbitrary>], iteration_bounds = array<i64: 1, 1>, scalar_prefetch = 0 : i64, scratch_operands = 2 : i64, tpu.core_type = #tpu.core_type<tc>, window_params = [{transform_indices = @transform_0, window_bounds = array<i64: 8, 128>}, {transform_indices = @transform_1, window_bounds = array<i64: 8, 128>}, {transform_indices = @transform_2, window_bounds = array<i64: 8, 1>}]} {
    %c0_i32 = arith.constant 0 : i32
    %0 = arith.cmpi eq, %arg1, %c0_i32 : i32
    %1 = arith.extui %0 : i1 to i32
    %c0_i32_0 = arith.constant 0 : i32
    %2 = arith.cmpi ne, %1, %c0_i32_0 : i32
    scf.if %2 {
      %cst_19 = arith.constant 0.000000e+00 : f32
      %35 = vector.broadcast %cst_19 : f32 to vector<8x1xf32>
      %c0_20 = arith.constant 0 : index
      %c0_21 = arith.constant 0 : index
      %36 = vector.load %arg5[%c0_20, %c0_21] : memref<8x1xf32, #tpu.memory_space<vmem>>, vector<8x1xf32>
      tpu.vector_store %arg5[%c0_20, %c0_21], %35 {strides = array<i32>} : memref<8x1xf32, #tpu.memory_space<vmem>>, vector<8x1xf32>,
      %cst_22 = arith.constant 0.000000e+00 : f32
      %37 = vector.broadcast %cst_22 : f32 to vector<8x1xf32>
      %c0_23 = arith.constant 0 : index
      %c0_24 = arith.constant 0 : index
      %38 = vector.load %arg6[%c0_23, %c0_24] : memref<8x1xf32, #tpu.memory_space<vmem>>, vector<8x1xf32>
      tpu.vector_store %arg6[%c0_23, %c0_24], %37 {strides = array<i32>} : memref<8x1xf32, #tpu.memory_space<vmem>>, vector<8x1xf32>,
    } else {
    }
    %c0 = arith.constant 0 : index
    %c0_1 = arith.constant 0 : index
    %3 = vector.load %arg2[%c0, %c0_1] : memref<8x128xf32, #tpu.memory_space<vmem>>, vector<8x128xf32>
    %c0_2 = arith.constant 0 : index
    %c0_3 = arith.constant 0 : index
    %4 = vector.load %arg3[%c0_2, %c0_3] : memref<8x128xf32, #tpu.memory_space<vmem>>, vector<8x128xf32>
    %cst = arith.constant 0.000000e+00 : f32
    %5 = vector.broadcast %cst : f32 to vector<8x128xf32>
    %6 = arith.cmpf one, %4, %5 : vector<8x128xf32>
    %7 = arith.extui %6 : vector<8x128xi1> to vector<8x128xi32>
    %8 = arith.sitofp %7 : vector<8x128xi32> to vector<8x128xf32>
    %cst_4 = arith.constant 1.000000e+00 : f32
    %9 = vector.broadcast %cst_4 : f32 to vector<8x128xf32>
    %10 = arith.addf %9, %8 : vector<8x128xf32>
    %cst_5 = arith.constant 0.000000e+00 : f32
    %11 = vector.broadcast %cst_5 : f32 to vector<8x128xf32>
    %12 = arith.maximumf %3, %11 : vector<8x128xf32>
    %13 = arith.mulf %3, %4 : vector<8x128xf32>
    %14 = arith.subf %12, %13 : vector<8x128xf32>
    %15 = math.absf %3 : vector<8x128xf32>
    %cst_6 = arith.constant 0.000000e+00 : f32
    %16 = vector.broadcast %cst_6 : f32 to vector<8x128xf32>
    %17 = arith.subf %16, %15 : vector<8x128xf32>
    %18 = math.exp %17 : vector<8x128xf32>
    %19 = math.log1p %18 : vector<8x128xf32>
    %20 = arith.addf %14, %19 : vector<8x128xf32>
    %c0_7 = arith.constant 0 : index
    %c0_8 = arith.constant 0 : index
    %21 = vector.load %arg5[%c0_7, %c0_8] : memref<8x1xf32, #tpu.memory_space<vmem>>, vector<8x1xf32>
    %22 = arith.mulf %20, %10 : vector<8x128xf32>
    %cst_9 = arith.constant dense<0.000000e+00> : vector<8xf32>
    %23 = vector.multi_reduction <add>, %22, %cst_9 [1] : vector<8x128xf32> to vector<8xf32>
    %24 = vector.shape_cast %23 : vector<8xf32> to vector<8x1xf32>
    %25 = arith.addf %21, %24 : vector<8x1xf32>
    %c0_10 = arith.constant 0 : index
    %c0_11 = arith.constant 0 : index
    %26 = vector.load %arg5[%c0_10, %c0_11] : memref<8x1xf32, #tpu.memory_space<vmem>>, vector<8x1xf32>
    tpu.vector_store %arg5[%c0_10, %c0_11], %25 {strides = array<i32>} : memref<8x1xf32, #tpu.memory_space<vmem>>, vector<8x1xf32>,
    %c0_12 = arith.constant 0 : index
    %c0_13 = arith.constant 0 : index
    %27 = vector.load %arg6[%c0_12, %c0_13] : memref<8x1xf32, #tpu.memory_space<vmem>>, vector<8x1xf32>
    %cst_14 = arith.constant dense<0.000000e+00> : vector<8xf32>
    %28 = vector.multi_reduction <add>, %10, %cst_14 [1] : vector<8x128xf32> to vector<8xf32>
    %29 = vector.shape_cast %28 : vector<8xf32> to vector<8x1xf32>
    %30 = arith.addf %27, %29 : vector<8x1xf32>
    %c0_15 = arith.constant 0 : index
    %c0_16 = arith.constant 0 : index
    %31 = vector.load %arg6[%c0_15, %c0_16] : memref<8x1xf32, #tpu.memory_space<vmem>>, vector<8x1xf32>
    tpu.vector_store %arg6[%c0_15, %c0_16], %30 {strides = array<i32>} : memref<8x1xf32, #tpu.memory_space<vmem>>, vector<8x1xf32>,
    %c0_i32_17 = arith.constant 0 : i32
    %32 = arith.cmpi eq, %arg1, %c0_i32_17 : i32
    %33 = arith.extui %32 : i1 to i32
    %c0_i32_18 = arith.constant 0 : i32
    %34 = arith.cmpi ne, %33, %c0_i32_18 : i32
    scf.if %34 {
      %c0_19 = arith.constant 0 : index
      %c0_20 = arith.constant 0 : index
      %35 = vector.load %arg5[%c0_19, %c0_20] : memref<8x1xf32, #tpu.memory_space<vmem>>, vector<8x1xf32>
      %c0_21 = arith.constant 0 : index
      %c0_22 = arith.constant 0 : index
      %36 = vector.load %arg6[%c0_21, %c0_22] : memref<8x1xf32, #tpu.memory_space<vmem>>, vector<8x1xf32>
      %37 = arith.divf %35, %36 : vector<8x1xf32>
      %c0_23 = arith.constant 0 : index
      %c0_24 = arith.constant 0 : index
      %38 = vector.load %arg4[%c0_23, %c0_24] : memref<8x1xf32, #tpu.memory_space<vmem>>, vector<8x1xf32>
      tpu.vector_store %arg4[%c0_23, %c0_24], %37 {strides = array<i32>} : memref<8x1xf32, #tpu.memory_space<vmem>>, vector<8x1xf32>,
    } else {
    }
    return
  }
  func.func @transform_0(%arg0: i32, %arg1: i32) -> (i32, i32) {
    %c0_i32 = arith.constant 0 : i32
    return %arg0, %arg1 : i32, i32
  }
  func.func @transform_1(%arg0: i32, %arg1: i32) -> (i32, i32) {
    %c0_i32 = arith.constant 0 : i32
    return %arg0, %arg1 : i32, i32
  }
  func.func @transform_2(%arg0: i32, %arg1: i32) -> (i32, i32) {
    %c0_i32 = arith.constant 0 : i32
    %c0_i32_0 = arith.constant 0 : i32
    return %arg0, %c0_i32 : i32, i32
  }
}

</mosaic_0001>

<llo_original>
// kernel: tpu_custom_call.1
$region0: #{tpu_custom_call.1}
  #allocation0 [shape = 'u32[]', space=smem, size = 0x4, offset = 0x4, fixed_abs, tag = 'smem constant byte address 0x4 - core index']
  #allocation1 [shape = 'u32[144,128]{1,0:T(1,128)}', space=vmem, size = 0x12000, scoped, tag = 'internal scratch']
  #allocation2 [shape = 'f32[8,1]{1,0:T(8,128)}', space=vmem, size = 0x1000, scoped, tag = 'scratch operand']
  #allocation3 [shape = 'f32[8,1]{1,0:T(8,128)}', space=vmem, size = 0x1000, scoped, tag = 'scratch operand']
  %s0 = inlined_call_operand.hbm [shape: f32[8,128], index: 0, kind: input, shape index: {}]
  %s1 = inlined_call_operand.hbm [shape: f32[8,128], index: 1, kind: input, shape index: {}]
  %s2 = inlined_call_operand.vmem [shape: f32[8,1], index: 2, kind: output, shape index: {}]
  %s3 = sld [smem:[#allocation0]]
  $region34: #{tpu_custom_call.1} parent=0
    _
  %s5 = ssub.s32 1, %s3
  %s6 = scalar_select 0, %s5, %s3
  $region1: #{tpu_custom_call.1} parent=0
    #allocation4 [shape = 'u8[4096]{0}', space=vmem, size = 0x1000, scoped, tag = 'input window, operand 0, single buffered']
    #allocation5 [shape = 's32[1]{0}', space=sflag, size = 0x4, scoped, tag = 'scoped memory for tpu_custom_call.1']
    #allocation6 [shape = 'u8[4096]{0}', space=vmem, size = 0x1000, scoped, tag = 'input window, operand 1, single buffered']
    #allocation7 [shape = 's32[1]{0}', space=sflag, size = 0x4, scoped, tag = 'scoped memory for tpu_custom_call.1']
    %7 = vsyncpa [#allocation5], 0
    %8 = vsyncpa [#allocation7], 0
    // Predicated region
    $region2: #{tpu_custom_call.1} parent=1 // pred_check
      _
    $region3: #{tpu_custom_call.1} parent=1 // pred_check_branch
      %10 = sbr.rel (0) target = $region5
    $region4: #{tpu_custom_call.1} parent=1 // pred_region
      %s12 = ssub.s32 128, 128
      %13 = vsyncadd [#allocation5], %s12
      %s15 = sshll.u32 [#allocation4], 4
      %s16 = int_to_ptr.vmem [resolvable:$true] %s15
      %18 = dma.hbm_to_vmem [thread:$0]  %s0, 128, %s16, [#allocation5]
    $region5: #{tpu_custom_call.1} parent=1 // pred_fallthru
      _
    // Predicated region
    $region6: #{tpu_custom_call.1} parent=1 // pred_check
      _
    $region7: #{tpu_custom_call.1} parent=1 // pred_check_branch
      %20 = sbr.rel (0) target = $region9
    $region8: #{tpu_custom_call.1} parent=1 // pred_region
      %s22 = ssub.s32 128, 128
      %23 = vsyncadd [#allocation7], %s22
      %s25 = sshll.u32 [#allocation6], 4
      %s26 = int_to_ptr.vmem [resolvable:$true] %s25
      %28 = dma.hbm_to_vmem [thread:$0]  %s1, 128, %s26, [#allocation7]
    $region9: #{tpu_custom_call.1} parent=1 // pred_fallthru
      _
    // Predicated region
    $region10: #{tpu_custom_call.1} parent=1 // pred_check
      _
    $region11: #{tpu_custom_call.1} parent=1 // pred_check_branch
      %30 = sbr.rel (0) target = $region13
    $region12: #{tpu_custom_call.1} parent=1 // pred_region
      %31 = dma.done [#allocation5], 128
    $region13: #{tpu_custom_call.1} parent=1 // pred_fallthru
      _
    // Predicated region
    $region14: #{tpu_custom_call.1} parent=1 // pred_check
      _
    $region15: #{tpu_custom_call.1} parent=1 // pred_check_branch
      %33 = sbr.rel (0) target = $region17
    $region16: #{tpu_custom_call.1} parent=1 // pred_region
      %34 = dma.done [#allocation7], 128
    $region17: #{tpu_custom_call.1} parent=1 // pred_fallthru
      _
    %p35 = scmp.eq.s32.totalorder 0, 0
    // Predicated region
    $region18: #{tpu_custom_call.1} parent=1 // pred_check
      %p36 = pneg %p35
    $region19: #{tpu_custom_call.1} parent=1 // pred_check_branch
      %38 = sbr.rel (%p36) target = $region21
    $region20: #{tpu_custom_call.1} parent=1 // pred_region
      %vm39 = vcmask 7168
      %40 = vst.msk [vmem:[#allocation2] sm:$0xff] %vm39, 0.0
      %41 = vst.msk [vmem:[#allocation3] sm:$0xff] %vm39, 0.0
    $region21: #{tpu_custom_call.1} parent=1 // pred_fallthru
      _
    %v42 = vld [vmem:[#allocation4] sm:$0xff]
    %v43 = vld [vmem:[#allocation6] sm:$0xff]
    %vm44 = vcmp.ne.f32.partialorder %v43, 0.0
    %v45 = vsel %vm44, 1, 0
    %v46 = vcvt.s32.f32 %v45
    %v47 = vadd.f32 %v46, 1.0
    %v48 = vmax.f32 %v42, 0.0
    %v49 = vmul.f32 %v42, %v43
    %v50 = vsub.f32 %v48, %v49
    %v51 = vand.u32 2147483647, %v42
    %v52 = vsub.f32 0.0, %v51
    %v53 = vmul.f32 %v52, 1.442695
    %v54 = vpow.pop %v53
    %v55 = vadd.f32 %v54, 1.0
    %v56 = vlog2.pop %v55
    %v57 = vmul.f32 %v56, 0.6931472
    %v58 = vmul.f32 -0.5, %v54
    %v59 = vadd.f32 %v58, 1.0
    %v60 = vmul.f32 %v59, %v54
    %v61 = vand.u32 2147483647, %v54
    %vm62 = vcmp.lt.f32.partialorder %v61, 0.0004427343
    %v63 = vsel %vm62, %v60, %v57
    %v64 = vadd.f32 %v50, %v63
    %v65 = vld [vmem:[#allocation2] sm:$0xff]
    %v66 = vmul.f32 %v64, %v47
    %67 = vadd.xlane.f32.xlu0 %v66
    %v68 = vpop.xlane.xlu0 %67
    %v69 = vadd.f32 %v65, %v68
    %vm70 = vcmask 7168
    %71 = vst.msk [vmem:[#allocation2] sm:$0xff] %vm70, %v69
    %v72 = vld [vmem:[#allocation3] sm:$0xff]
    %73 = vadd.xlane.f32.xlu0 %v47
    %v74 = vpop.xlane.xlu0 %73
    %v75 = vadd.f32 %v72, %v74
    %76 = vst.msk [vmem:[#allocation3] sm:$0xff] %vm70, %v75
    // Predicated region
    $region22: #{tpu_custom_call.1} parent=1 // pred_check
      %p77 = pneg %p35
    $region23: #{tpu_custom_call.1} parent=1 // pred_check_branch
      %79 = sbr.rel (%p77) target = $region25
    $region24: #{tpu_custom_call.1} parent=1 // pred_region
      %v80 = vld [vmem:[#allocation2] sm:$0xff]
      %v81 = vld [vmem:[#allocation3] sm:$0xff]
      %v82 = vrcp.pop %v81
      %v83 = vmul.f32 %v80, %v82
      %84 = vst.msk [vmem:[%s2] sm:$0xff] %vm70, %v83
    $region25: #{tpu_custom_call.1} parent=1 // pred_fallthru
      _
    // Predicated region
    $region26: #{tpu_custom_call.1} parent=1 // pred_check
      _
    $region27: #{tpu_custom_call.1} parent=1 // pred_check_branch
      %86 = sbr.rel (0) target = $region29
    $region28: #{tpu_custom_call.1} parent=1 // pred_region
      _
    $region29: #{tpu_custom_call.1} parent=1 // pred_fallthru
      _
    // Predicated region
    $region30: #{tpu_custom_call.1} parent=1 // pred_check
      _
    $region31: #{tpu_custom_call.1} parent=1 // pred_check_branch
      %88 = sbr.rel (0) target = $region33
    $region32: #{tpu_custom_call.1} parent=1 // pred_region
      _
    $region33: #{tpu_custom_call.1} parent=1 // pred_fallthru
      _
    %89 = vsyncpa [#allocation5], 1
    %90 = vsyncpa [#allocation7], 1

</llo_original>
